<compile_context>
chip_gen: v6e
topology: v6e:2x2x1
jax: 0.10.0
libtpu: 0.0.40
codegen_flags: <defaults>
</compile_context>

<pallas_src>
import functools

import jax
import jax.numpy as jnp
from jax.experimental import pallas as pl
from jax.experimental.pallas import tpu as pltpu


def _round_up(x, m):
    return (x + m - 1) // m * m


# ---------- Kernel 1: fused 4x4/s2 conv (4 shifted matmuls) + streamed BN ----
def _conv_stats_kernel(z_ref, w_ref, y_ref, s_ref, m2_ref, *, Ho, Wo, Kz, Cp):
    # z_ref : (1, Ho+1, Wo+1, Kz) bf16  space-to-depth input, one image
    # w_ref : (2, 2, Kz, Cp)      bf16  per-shift weight (VMEM-resident)
    # y_ref : (1, Ho*Wo, Cp)      bf16  conv output (pre-BN)
    # s_ref : (1, 8, Cp)          f32   per-image channel sum        (row 0)
    # m2_ref: (1, 8, Cp)          f32   per-image sum((y-mean_i)^2)  (row 0)
    acc = jnp.zeros((Ho * Wo, Cp), jnp.float32)
    for dh in range(2):
        for dw in range(2):
            win = z_ref[0:1, dh:dh + Ho, dw:dw + Wo, :]        # (1, Ho, Wo, Kz)
            lhs = win.reshape(Ho * Wo, Kz)
            wk = w_ref[dh:dh + 1, dw:dw + 1, :, :].reshape(Kz, Cp)
            acc = acc + jnp.dot(lhs, wk, preferred_element_type=jnp.float32)

    # bf16 down-cast only for the stored intermediate; stats come from f32 acc.
    y_ref[...] = acc.reshape(1, Ho * Wo, Cp).astype(y_ref.dtype)

    inv_n = 1.0 / float(Ho * Wo)
    s = jnp.sum(acc, axis=0, keepdims=True)                    # (1, Cp)
    mu = s * inv_n
    m2 = jnp.sum((acc - mu) ** 2, axis=0, keepdims=True)       # (1, Cp)
    s_ref[0:1, 0:1, :] = s.reshape(1, 1, Cp)
    m2_ref[0:1, 0:1, :] = m2.reshape(1, 1, Cp)


# ---------- Kernel 2: folded BatchNorm scale/shift + LeakyReLU(0.2), bf16 ----
def _bn_lrelu_kernel(y_ref, a_ref, b_ref, o_ref):
    # y_ref/o_ref: (1, Ho*Wo, Cp) bf16   a_ref/b_ref: (1, Cp) f32
    yn = y_ref[...].astype(jnp.float32) * a_ref[...][None] + b_ref[...][None]
    o_ref[...] = jnp.where(yn >= 0.0, yn, 0.2 * yn).astype(o_ref.dtype)


def cnn_block_forward(x_nchw, weight, gamma, beta, stride=2, eps=1e-5):
    if stride != 2:
        raise NotImplementedError("cnn_block_forward supports stride=2 only")

    N, Cin, H, W = x_nchw.shape
    Cout, _, KH, KW = weight.shape
    assert (KH, KW) == (4, 4)

    Ho = (H + 2 - KH) // 2 + 1
    Wo = (W + 2 - KW) // 2 + 1
    Hq, Wq = Ho + 1, Wo + 1
    Kz = 4 * Cin                       # per-shift contraction depth
    Cp = _round_up(Cout, 128)          # lane-dense output channels
    M = N * Ho * Wo

    # --- XLA prologue: reflect pad + stride-2 space-to-depth (one pass, same
    # byte count as the input; replaces the old 4x-expanded im2col matrix). ---
    xp = jnp.pad(x_nchw, ((0, 0), (0, 0), (1, 1), (1, 1)), mode="reflect")
    slabs = [xp[:, :, ph::2, pw::2][:, :, :Hq, :Wq]
             for ph in range(2) for pw in range(2)]            # p = 2*ph + pw
    z = jnp.stack(slabs, axis=1).reshape(N, Kz, Hq, Wq)        # chan = p*Cin + c
    z = z.astype(jnp.bfloat16).transpose(0, 2, 3, 1)           # (N, Hq, Wq, Kz)

    # Weight OIHW -> (dh, dw, [ph, pw, c], o); matches z's channel ordering.
    w_r = weight.reshape(Cout, Cin, 2, 2, 2, 2)                # (o,c,dh,ph,dw,pw)
    wz = w_r.transpose(2, 4, 3, 5, 1, 0).reshape(2, 2, Kz, Cout)
    wz = jnp.pad(wz.astype(jnp.bfloat16),
                 ((0, 0), (0, 0), (0, 0), (0, Cp - Cout)))     # (2,2,Kz,Cp)

    kernel1 = functools.partial(_conv_stats_kernel, Ho=Ho, Wo=Wo, Kz=Kz, Cp=Cp)
    y, psum, pm2 = pl.pallas_call(
        kernel1,
        grid=(N,),
        in_specs=[
            pl.BlockSpec((1, Hq, Wq, Kz), lambda n: (n, 0, 0, 0)),
            # constant block index -> weight DMA'd once, stays VMEM-resident
            pl.BlockSpec((2, 2, Kz, Cp), lambda n: (0, 0, 0, 0)),
        ],
        out_specs=[
            pl.BlockSpec((1, Ho * Wo, Cp), lambda n: (n, 0, 0)),
            pl.BlockSpec((1, 8, Cp), lambda n: (n, 0, 0)),
            pl.BlockSpec((1, 8, Cp), lambda n: (n, 0, 0)),
        ],
        out_shape=[
            jax.ShapeDtypeStruct((N, Ho * Wo, Cp), jnp.bfloat16),
            jax.ShapeDtypeStruct((N, 8, Cp), jnp.float32),
            jax.ShapeDtypeStruct((N, 8, Cp), jnp.float32),
        ],
        compiler_params=pltpu.CompilerParams(
            dimension_semantics=("parallel",),
            # sized for the smallest (64 MiB) v7x VMEM; can be raised on
            # 128 MiB v5e/v6e for very large layers
            vmem_limit_bytes=48 * 1024 * 1024),
    )(z, wz)

    # --- Tiny XLA finalize: Chan-style combine of per-image (sum, M2) into
    # global biased mean/var, folded into a per-channel scale a and shift b. --
    n_per = jnp.float32(Ho * Wo)
    cnt = jnp.float32(M)
    s_i = psum[:, 0, :]                                        # (N, Cp)
    m2_i = pm2[:, 0, :]                                        # (N, Cp)
    mean_i = s_i / n_per
    mean = jnp.sum(s_i, axis=0) / cnt                          # (Cp,)
    m2 = jnp.sum(m2_i, axis=0) + n_per * jnp.sum((mean_i - mean) ** 2, axis=0)
    var = m2 / cnt                                             # biased (BN fwd)
    inv = jax.lax.rsqrt(var + eps)
    g_pad = jnp.pad(gamma.astype(jnp.float32), (0, Cp - Cout))
    b_pad = jnp.pad(beta.astype(jnp.float32), (0, Cp - Cout))
    a_vec = (g_pad * inv)[None, :]                             # (1, Cp)
    b_vec = (b_pad - mean * g_pad * inv)[None, :]              # (1, Cp)

    out = pl.pallas_call(
        _bn_lrelu_kernel,
        grid=(N,),
        in_specs=[
            pl.BlockSpec((1, Ho * Wo, Cp), lambda n: (n, 0, 0)),
            pl.BlockSpec((1, Cp), lambda n: (0, 0)),
            pl.BlockSpec((1, Cp), lambda n: (0, 0)),
        ],
        out_specs=pl.BlockSpec((1, Ho * Wo, Cp), lambda n: (n, 0, 0)),
        out_shape=jax.ShapeDtypeStruct((N, Ho * Wo, Cp), jnp.bfloat16),
        compiler_params=pltpu.CompilerParams(
            dimension_semantics=("parallel",),
            vmem_limit_bytes=32 * 1024 * 1024),
    )(y, a_vec, b_vec)

    # Strip channel padding and convert to the module's NCHW f32 layout in one
    # XLA pass (callers that consume NHWC can skip the transpose).
    out = out[:, :, :Cout].reshape(N, Ho, Wo, Cout)
    return out.transpose(0, 3, 1, 2).astype(jnp.float32)


# --------------------------- pure-JAX reference ------------------------------
def _reference(x, weight, gamma, beta, stride=2, eps=1e-5):
    xp = jnp.pad(x, ((0, 0), (0, 0), (1, 1), (1, 1)), mode="reflect")
    y = jax.lax.conv_general_dilated(
        xp, weight, window_strides=(stride, stride), padding="VALID",
        dimension_numbers=("NCHW", "OIHW", "NCHW"))
    mu = y.mean(axis=(0, 2, 3), keepdims=True)
    var = ((y - mu) ** 2).mean(axis=(0, 2, 3), keepdims=True)
    yn = (y - mu) * jax.lax.rsqrt(var + eps)
    yn = yn * gamma.reshape(1, -1, 1, 1) + beta.reshape(1, -1, 1, 1)
    return jnp.where(yn >= 0.0, yn, 0.2 * yn)


if __name__ == "__main__":
    key = jax.random.PRNGKey(0)
    k_x, k_w, k_g, k_b = jax.random.split(key, 4)

    N, Cin, Cout, H, W = 2, 4, 8, 16, 16

    x = jax.random.normal(k_x, (N, Cin, H, W), dtype=jnp.float32)
    # Conv2d weight (OIHW), bias=False in the module.
    weight = 0.1 * jax.random.normal(k_w, (Cout, Cin, 4, 4), dtype=jnp.float32)
    # Slightly non-trivial BN affine to exercise the folded scale/shift.
    gamma = 1.0 + 0.1 * jax.random.normal(k_g, (Cout,), dtype=jnp.float32)
    beta = 0.1 * jax.random.normal(k_b, (Cout,), dtype=jnp.float32)

    out = cnn_block_forward(x, weight, gamma, beta)
    out = jax.block_until_ready(out)

    ref = _reference(x, weight, gamma, beta)
    assert out.shape == ref.shape == (N, Cout, H // 2, W // 2)
    # bf16 MXU inputs + bf16 intermediate (f32 accumulation / f32 BN stats):
    # loose-but-meaningful tolerance on O(1) normalized outputs.
    assert jnp.allclose(out, ref, atol=5e-2, rtol=5e-2)

    print("KERNEL_OK")
</pallas_src>

<mosaic_0001>
module attributes {stable_mosaic.version = 11 : i64} {
  func.func @_conv_stats_kernel(%arg0: i32, %arg1: memref<1x9x9x16xbf16, #tpu.memory_space<vmem>>, %arg2: memref<2x2x16x128xbf16, #tpu.memory_space<vmem>>, %arg3: memref<1x64x128xbf16, #tpu.memory_space<vmem>>, %arg4: memref<1x8x128xf32, #tpu.memory_space<vmem>>, %arg5: memref<1x8x128xf32, #tpu.memory_space<vmem>>) attributes {dimension_semantics = [#tpu.dimension_semantics<parallel>], iteration_bounds = array<i64: 2>, scalar_prefetch = 0 : i64, scratch_operands = 0 : i64, tpu.core_type = #tpu.core_type<tc>, window_params = [{transform_indices = @transform_0, window_bounds = array<i64: 1, 9, 9, 16>}, {pipeline_mode = #tpu.pipeline_mode<synchronous>, transform_indices = @transform_1, window_bounds = array<i64: 2, 2, 16, 128>}, {transform_indices = @transform_2, window_bounds = array<i64: 1, 64, 128>}, {transform_indices = @transform_3, window_bounds = array<i64: 1, 8, 128>}, {transform_indices = @transform_4, window_bounds = array<i64: 1, 8, 128>}]} {
    %cst = arith.constant 0.000000e+00 : f32
    %0 = vector.broadcast %cst : f32 to vector<64x128xf32>
    %c0 = arith.constant 0 : index
    %c0_0 = arith.constant 0 : index
    %c0_1 = arith.constant 0 : index
    %c0_2 = arith.constant 0 : index
    %1 = vector.load %arg1[%c0, %c0_0, %c0_1, %c0_2] : memref<1x9x9x16xbf16, #tpu.memory_space<vmem>>, vector<1x8x8x16xbf16>
    %2 = vector.shape_cast %1 : vector<1x8x8x16xbf16> to vector<64x16xbf16>
    %c0_3 = arith.constant 0 : index
    %c0_4 = arith.constant 0 : index
    %c0_5 = arith.constant 0 : index
    %c0_6 = arith.constant 0 : index
    %3 = vector.load %arg2[%c0_3, %c0_4, %c0_5, %c0_6] : memref<2x2x16x128xbf16, #tpu.memory_space<vmem>>, vector<1x1x16x128xbf16>
    %4 = vector.shape_cast %3 : vector<1x1x16x128xbf16> to vector<16x128xbf16>
    %cst_7 = arith.constant dense<0.000000e+00> : vector<64x128xf32>
    %5 = tpu.matmul %2, %4, %cst_7 {dimension_numbers = #tpu.dot_dimension_numbers<[1], [0], [0], [1], [0, 0, 1, 1], [], []>} : vector<64x16xbf16>, vector<16x128xbf16>, vector<64x128xf32> -> vector<64x128xf32>
    %6 = arith.addf %0, %5 : vector<64x128xf32>
    %c0_8 = arith.constant 0 : index
    %c0_9 = arith.constant 0 : index
    %c1 = arith.constant 1 : index
    %c0_10 = arith.constant 0 : index
    %7 = vector.load %arg1[%c0_8, %c0_9, %c1, %c0_10] : memref<1x9x9x16xbf16, #tpu.memory_space<vmem>>, vector<1x8x8x16xbf16>
    %8 = vector.shape_cast %7 : vector<1x8x8x16xbf16> to vector<64x16xbf16>
    %c0_11 = arith.constant 0 : index
    %c1_12 = arith.constant 1 : index
    %c0_13 = arith.constant 0 : index
    %c0_14 = arith.constant 0 : index
    %9 = vector.load %arg2[%c0_11, %c1_12, %c0_13, %c0_14] : memref<2x2x16x128xbf16, #tpu.memory_space<vmem>>, vector<1x1x16x128xbf16>
    %10 = vector.shape_cast %9 : vector<1x1x16x128xbf16> to vector<16x128xbf16>
    %cst_15 = arith.constant dense<0.000000e+00> : vector<64x128xf32>
    %11 = tpu.matmul %8, %10, %cst_15 {dimension_numbers = #tpu.dot_dimension_numbers<[1], [0], [0], [1], [0, 0, 1, 1], [], []>} : vector<64x16xbf16>, vector<16x128xbf16>, vector<64x128xf32> -> vector<64x128xf32>
    %12 = arith.addf %6, %11 : vector<64x128xf32>
    %c0_16 = arith.constant 0 : index
    %c1_17 = arith.constant 1 : index
    %c0_18 = arith.constant 0 : index
    %c0_19 = arith.constant 0 : index
    %13 = vector.load %arg1[%c0_16, %c1_17, %c0_18, %c0_19] : memref<1x9x9x16xbf16, #tpu.memory_space<vmem>>, vector<1x8x8x16xbf16>
    %14 = vector.shape_cast %13 : vector<1x8x8x16xbf16> to vector<64x16xbf16>
    %c1_20 = arith.constant 1 : index
    %c0_21 = arith.constant 0 : index
    %c0_22 = arith.constant 0 : index
    %c0_23 = arith.constant 0 : index
    %15 = vector.load %arg2[%c1_20, %c0_21, %c0_22, %c0_23] : memref<2x2x16x128xbf16, #tpu.memory_space<vmem>>, vector<1x1x16x128xbf16>
    %16 = vector.shape_cast %15 : vector<1x1x16x128xbf16> to vector<16x128xbf16>
    %cst_24 = arith.constant dense<0.000000e+00> : vector<64x128xf32>
    %17 = tpu.matmul %14, %16, %cst_24 {dimension_numbers = #tpu.dot_dimension_numbers<[1], [0], [0], [1], [0, 0, 1, 1], [], []>} : vector<64x16xbf16>, vector<16x128xbf16>, vector<64x128xf32> -> vector<64x128xf32>
    %18 = arith.addf %12, %17 : vector<64x128xf32>
    %c0_25 = arith.constant 0 : index
    %c1_26 = arith.constant 1 : index
    %c1_27 = arith.constant 1 : index
    %c0_28 = arith.constant 0 : index
    %19 = vector.load %arg1[%c0_25, %c1_26, %c1_27, %c0_28] : memref<1x9x9x16xbf16, #tpu.memory_space<vmem>>, vector<1x8x8x16xbf16>
    %20 = vector.shape_cast %19 : vector<1x8x8x16xbf16> to vector<64x16xbf16>
    %c1_29 = arith.constant 1 : index
    %c1_30 = arith.constant 1 : index
    %c0_31 = arith.constant 0 : index
    %c0_32 = arith.constant 0 : index
    %21 = vector.load %arg2[%c1_29, %c1_30, %c0_31, %c0_32] : memref<2x2x16x128xbf16, #tpu.memory_space<vmem>>, vector<1x1x16x128xbf16>
    %22 = vector.shape_cast %21 : vector<1x1x16x128xbf16> to vector<16x128xbf16>
    %cst_33 = arith.constant dense<0.000000e+00> : vector<64x128xf32>
    %23 = tpu.matmul %20, %22, %cst_33 {dimension_numbers = #tpu.dot_dimension_numbers<[1], [0], [0], [1], [0, 0, 1, 1], [], []>} : vector<64x16xbf16>, vector<16x128xbf16>, vector<64x128xf32> -> vector<64x128xf32>
    %24 = arith.addf %18, %23 : vector<64x128xf32>
    %25 = vector.shape_cast %24 : vector<64x128xf32> to vector<1x64x128xf32>
    %26 = arith.truncf %25 : vector<1x64x128xf32> to vector<1x64x128xbf16>
    %c0_34 = arith.constant 0 : index
    %c0_35 = arith.constant 0 : index
    %c0_36 = arith.constant 0 : index
    %27 = vector.load %arg3[%c0_34, %c0_35, %c0_36] : memref<1x64x128xbf16, #tpu.memory_space<vmem>>, vector<1x64x128xbf16>
    tpu.vector_store %arg3[%c0_34, %c0_35, %c0_36], %26 {strides = array<i32>} : memref<1x64x128xbf16, #tpu.memory_space<vmem>>, vector<1x64x128xbf16>,
    %cst_37 = arith.constant dense<0.000000e+00> : vector<128xf32>
    %28 = vector.multi_reduction <add>, %24, %cst_37 [0] : vector<64x128xf32> to vector<128xf32>
    %29 = vector.shape_cast %28 : vector<128xf32> to vector<1x128xf32>
    %cst_38 = arith.constant 1.562500e-02 : f32
    %30 = vector.broadcast %cst_38 : f32 to vector<1x128xf32>
    %31 = arith.mulf %29, %30 : vector<1x128xf32>
    %32 = vector.broadcast %31 : vector<1x128xf32> to vector<64x128xf32>
    %33 = arith.subf %24, %32 : vector<64x128xf32>
    %34 = arith.mulf %33, %33 : vector<64x128xf32>
    %cst_39 = arith.constant dense<0.000000e+00> : vector<128xf32>
    %35 = vector.multi_reduction <add>, %34, %cst_39 [0] : vector<64x128xf32> to vector<128xf32>
    %36 = vector.shape_cast %35 : vector<128xf32> to vector<1x128xf32>
    %37 = vector.shape_cast %29 : vector<1x128xf32> to vector<1x1x128xf32>
    %c0_40 = arith.constant 0 : index
    %c0_41 = arith.constant 0 : index
    %c0_42 = arith.constant 0 : index
    %38 = vector.load %arg4[%c0_40, %c0_41, %c0_42] : memref<1x8x128xf32, #tpu.memory_space<vmem>>, vector<1x1x128xf32>
    tpu.vector_store %arg4[%c0_40, %c0_41, %c0_42], %37 {strides = array<i32>} : memref<1x8x128xf32, #tpu.memory_space<vmem>>, vector<1x1x128xf32>,
    %39 = vector.shape_cast %36 : vector<1x128xf32> to vector<1x1x128xf32>
    %c0_43 = arith.constant 0 : index
    %c0_44 = arith.constant 0 : index
    %c0_45 = arith.constant 0 : index
    %40 = vector.load %arg5[%c0_43, %c0_44, %c0_45] : memref<1x8x128xf32, #tpu.memory_space<vmem>>, vector<1x1x128xf32>
    tpu.vector_store %arg5[%c0_43, %c0_44, %c0_45], %39 {strides = array<i32>} : memref<1x8x128xf32, #tpu.memory_space<vmem>>, vector<1x1x128xf32>,
    return
  }
  func.func @transform_0(%arg0: i32) -> (i32, i32, i32, i32) {
    %c0_i32 = arith.constant 0 : i32
    %c0_i32_0 = arith.constant 0 : i32
    %c0_i32_1 = arith.constant 0 : i32
    %c0_i32_2 = arith.constant 0 : i32
    return %arg0, %c0_i32, %c0_i32_0, %c0_i32_1 : i32, i32, i32, i32
  }
  func.func @transform_1(%arg0: i32) -> (i32, i32, i32, i32) {
    %c0_i32 = arith.constant 0 : i32
    %c0_i32_0 = arith.constant 0 : i32
    %c0_i32_1 = arith.constant 0 : i32
    %c0_i32_2 = arith.constant 0 : i32
    %c0_i32_3 = arith.constant 0 : i32
    return %c0_i32, %c0_i32_0, %c0_i32_1, %c0_i32_2 : i32, i32, i32, i32
  }
  func.func @transform_2(%arg0: i32) -> (i32, i32, i32) {
    %c0_i32 = arith.constant 0 : i32
    %c0_i32_0 = arith.constant 0 : i32
    %c0_i32_1 = arith.constant 0 : i32
    return %arg0, %c0_i32, %c0_i32_0 : i32, i32, i32
  }
  func.func @transform_3(%arg0: i32) -> (i32, i32, i32) {
    %c0_i32 = arith.constant 0 : i32
    %c0_i32_0 = arith.constant 0 : i32
    %c0_i32_1 = arith.constant 0 : i32
    return %arg0, %c0_i32, %c0_i32_0 : i32, i32, i32
  }
  func.func @transform_4(%arg0: i32) -> (i32, i32, i32) {
    %c0_i32 = arith.constant 0 : i32
    %c0_i32_0 = arith.constant 0 : i32
    %c0_i32_1 = arith.constant 0 : i32
    return %arg0, %c0_i32, %c0_i32_0 : i32, i32, i32
  }
}

</mosaic_0001>

<llo_original>
// kernel: tpu_custom_call.1
$region0: #{tpu_custom_call.1}
  #allocation0 [shape = 'u32[]', space=smem, size = 0x4, offset = 0x4, fixed_abs, tag = 'smem constant byte address 0x4 - core index']
  #allocation1 [shape = 'u32[144,128]{1,0:T(1,128)}', space=vmem, size = 0x12000, scoped, tag = 'internal scratch']
  %s0 = inlined_call_operand.vmem [shape: bf16[2,9,9,16], index: 0, kind: input, shape index: {}]
  %s1 = inlined_call_operand.vmem [shape: bf16[2,2,16,128], index: 1, kind: input, shape index: {}]
  %s2 = inlined_call_operand.hbm [shape: bf16[2,64,128], index: 2, kind: output, shape index: {0}]
  %s3 = inlined_call_operand.hbm [shape: f32[2,8,128], index: 3, kind: output, shape index: {1}]
  %s4 = inlined_call_operand.hbm [shape: f32[2,8,128], index: 4, kind: output, shape index: {2}]
  %5 = xla_tuple %s2, %s3, %s4
  %s6 = sld [smem:[#allocation0]]
  $region57: #{tpu_custom_call.1} parent=0
    _
  %s8 = ssub.s32 1, %s6
  %s9 = scalar_select 0, %s8, %s6
  $region1: #{tpu_custom_call.1} parent=0
    #allocation2 [shape = 'u8[32768]{0}', space=vmem, size = 0x8000, scoped, tag = 'output window, operand 0']
    #allocation3 [shape = 's32[2]{0}', space=sflag, size = 0x8, scoped, tag = 'scoped memory for tpu_custom_call.1']
    #allocation4 [shape = 'u8[8192]{0}', space=vmem, size = 0x2000, scoped, tag = 'output window, operand 1']
    #allocation5 [shape = 's32[2]{0}', space=sflag, size = 0x8, scoped, tag = 'scoped memory for tpu_custom_call.1']
    #allocation6 [shape = 'u8[8192]{0}', space=vmem, size = 0x2000, scoped, tag = 'output window, operand 2']
    %10 = vsyncpa [#allocation3], 0
    %s11 = scalar_lea.sflag [#allocation3], 1
    %12 = vsyncpa %s11, 0
    %13 = vsyncpa [#allocation5], 0
    %s14 = scalar_lea.sflag [#allocation5], 1
    %15 = vsyncpa %s14, 0
    loop: start=0, step=1, limit=4
    $region2: #{tpu_custom_call.1} parent=1 // loop_pre_header
      _
    $region3: #{tpu_custom_call.1} parent=1 // loop_header
      %s17 = sphi 0, %s21
      %p18 = scmp.ge.s32.totalorder %s17, 4
      %s27 = sphi 0, %s29
      %s30 = sphi 0, %s27
      %s31 = sphi 0, %s30
      %s47 = sphi 0, %s31
      %s51 = sphi 0, %s51
      %s53 = sphi 0, %s51
      %s54 = sphi 0, %s53
      %s68 = sphi 0, %s54
      %s74 = sphi 0, %s76
      %s77 = sphi 0, %s74
      %s78 = sphi 0, %s77
      %s94 = sphi 0, %s78
      %s100 = sphi 0, %s102
      %s103 = sphi 0, %s100
      %s104 = sphi 0, %s103
      %s120 = sphi 0, %s104
      %s126 = sphi 0, %s128
      %s129 = sphi 0, %s126
      %s130 = sphi 0, %s129
      %s146 = sphi 0, %s130
    $region4: #{tpu_custom_call.1} parent=1 // loop_header_branch
      %20 = sbr.rel (%p18) target = $region8
    $region5: #{tpu_custom_call.1} parent=1 // loop_body
      %s22 = ssub.s32 %s17, 1
      %s23 = ssub.s32 %s17, 2
      %s24 = sadd.s32 %s17, 1
      %s25 = ssub.s32 %s17, %s24
      %p26 = scmp.eq.s32.totalorder %s25, 0
      %s28 = sadd.s32 %s27, 1
      %s29 = scalar_select %p26, %s27, %s28
      %p32 = pneg %p26
      %p33 = scmp.eq.s32.totalorder %s17, 1
      %p34 = por %p32, %p33
      %p35 = scmp.ne.s32.totalorder %s27, %s30
      %p36 = scmp.eq.s32.totalorder %s17, 0
      %p37 = por %p35, %p36
      %p38 = scmp.ne.s32.totalorder %s27, %s30
      %p39 = scmp.eq.s32.totalorder %s22, 1
      %p40 = por %p38, %p39
      %p41 = scmp.ne.s32.totalorder %s30, %s31
      %p42 = scmp.eq.s32.totalorder %s22, 0
      %p43 = por %p41, %p42
      %p44 = scmp.ne.s32.totalorder %s30, %s31
      %p45 = scmp.eq.s32.totalorder %s23, 1
      %p46 = por %p44, %p45
      %p48 = scmp.ne.s32.totalorder %s31, %s47
      %p49 = scmp.eq.s32.totalorder %s23, 0
      %p50 = por %p48, %p49
      %s52 = sadd.s32 %s51, 1
      %p55 = scmp.eq.s32.totalorder %s17, 1
      %p56 = scmp.ne.s32.totalorder %s51, %s53
      %p57 = scmp.eq.s32.totalorder %s17, 0
      %p58 = por %p56, %p57
      %p59 = scmp.ne.s32.totalorder %s51, %s53
      %p60 = scmp.eq.s32.totalorder %s22, 1
      %p61 = por %p59, %p60
      %p62 = scmp.ne.s32.totalorder %s53, %s54
      %p63 = scmp.eq.s32.totalorder %s22, 0
      %p64 = por %p62, %p63
      %p65 = scmp.ne.s32.totalorder %s53, %s54
      %p66 = scmp.eq.s32.totalorder %s23, 1
      %p67 = por %p65, %p66
      %p69 = scmp.ne.s32.totalorder %s54, %s68
      %p70 = scmp.eq.s32.totalorder %s23, 0
      %p71 = por %p69, %p70
      %s72 = ssub.s32 %s17, %s24
      %p73 = scmp.eq.s32.totalorder %s72, 0
      %s75 = sadd.s32 %s74, 1
      %s76 = scalar_select %p73, %s74, %s75
      %p79 = pneg %p73
      %p80 = scmp.eq.s32.totalorder %s17, 1
      %p81 = por %p79, %p80
      %p82 = scmp.ne.s32.totalorder %s74, %s77
      %p83 = scmp.eq.s32.totalorder %s17, 0
      %p84 = por %p82, %p83
      %p85 = scmp.ne.s32.totalorder %s74, %s77
      %p86 = scmp.eq.s32.totalorder %s22, 1
      %p87 = por %p85, %p86
      %p88 = scmp.ne.s32.totalorder %s77, %s78
      %p89 = scmp.eq.s32.totalorder %s22, 0
      %p90 = por %p88, %p89
      %p91 = scmp.ne.s32.totalorder %s77, %s78
      %p92 = scmp.eq.s32.totalorder %s23, 1
      %p93 = por %p91, %p92
      %p95 = scmp.ne.s32.totalorder %s78, %s94
      %p96 = scmp.eq.s32.totalorder %s23, 0
      %p97 = por %p95, %p96
      %s98 = ssub.s32 %s17, %s24
      %p99 = scmp.eq.s32.totalorder %s98, 0
      %s101 = sadd.s32 %s100, 1
      %s102 = scalar_select %p99, %s100, %s101
      %p105 = pneg %p99
      %p106 = scmp.eq.s32.totalorder %s17, 1
      %p107 = por %p105, %p106
      %p108 = scmp.ne.s32.totalorder %s100, %s103
      %p109 = scmp.eq.s32.totalorder %s17, 0
      %p110 = por %p108, %p109
      %p111 = scmp.ne.s32.totalorder %s100, %s103
      %p112 = scmp.eq.s32.totalorder %s22, 1
      %p113 = por %p111, %p112
      %p114 = scmp.ne.s32.totalorder %s103, %s104
      %p115 = scmp.eq.s32.totalorder %s22, 0
      %p116 = por %p114, %p115
      %p117 = scmp.ne.s32.totalorder %s103, %s104
      %p118 = scmp.eq.s32.totalorder %s23, 1
      %p119 = por %p117, %p118
      %p121 = scmp.ne.s32.totalorder %s104, %s120
      %p122 = scmp.eq.s32.totalorder %s23, 0
      %p123 = por %p121, %p122
      %s124 = ssub.s32 %s17, %s24
      %p125 = scmp.eq.s32.totalorder %s124, 0
      %s127 = sadd.s32 %s126, 1
      %s128 = scalar_select %p125, %s126, %s127
      %p131 = pneg %p125
      %p132 = scmp.eq.s32.totalorder %s17, 1
      %p133 = por %p131, %p132
      %p134 = scmp.ne.s32.totalorder %s126, %s129
      %p135 = scmp.eq.s32.totalorder %s17, 0
      %p136 = por %p134, %p135
      %p137 = scmp.ne.s32.totalorder %s126, %s129
      %p138 = scmp.eq.s32.totalorder %s22, 1
      %p139 = por %p137, %p138
      %p140 = scmp.ne.s32.totalorder %s129, %s130
      %p141 = scmp.eq.s32.totalorder %s22, 0
      %p142 = por %p140, %p141
      %p143 = scmp.ne.s32.totalorder %s129, %s130
      %p144 = scmp.eq.s32.totalorder %s23, 1
      %p145 = por %p143, %p144
      %p147 = scmp.ne.s32.totalorder %s130, %s146
      %p148 = scmp.eq.s32.totalorder %s23, 0
      %p149 = por %p147, %p148
      %p150 = scmp.le.s32.totalorder 1, %s17
      %p151 = scmp.lt.s32.totalorder %s17, 3
      %p152 = pnand %p150, %p151
      %p153 = pneg %p152
      // Predicated region
      $region9: #{tpu_custom_call.1} parent=5 // pred_check
        _
      $region10: #{tpu_custom_call.1} parent=5 // pred_check_branch
        %155 = sbr.rel (%p152) target = $region12
      $region11: #{tpu_custom_call.1} parent=5 // pred_region
        %s156 = ssub.s32 %s17, 1
        // Predicated region
        $region13: #{tpu_custom_call.1} parent=11 // pred_check
          %p157 = pneg %p64
        $region14: #{tpu_custom_call.1} parent=11 // pred_check_branch
          %159 = sbr.rel (%p157) target = $region16
        $region15: #{tpu_custom_call.1} parent=11 // pred_region
          _
        $region16: #{tpu_custom_call.1} parent=11 // pred_fallthru
          _
      $region12: #{tpu_custom_call.1} parent=5 // pred_fallthru
        _
      %p160 = scmp.lt.s32.totalorder %s17, 2
      // Predicated region
      $region17: #{tpu_custom_call.1} parent=5 // pred_check
        %p161 = pneg %p160
      $region18: #{tpu_custom_call.1} parent=5 // pred_check_branch
        %163 = sbr.rel (%p161) target = $region20
      $region19: #{tpu_custom_call.1} parent=5 // pred_region
        // Predicated region
        $region21: #{tpu_custom_call.1} parent=19 // pred_check
          %p164 = pneg %p37
        $region22: #{tpu_custom_call.1} parent=19 // pred_check_branch
          %166 = sbr.rel (%p164) target = $region24
        $region23: #{tpu_custom_call.1} parent=19 // pred_region
          %p167 = scmp.lt.s32.totalorder %s17, 1
          %s168 = scalar_select %p167, %s17, 1
          %s169 = smul.addr %s168, 18
          %s170 = smul.addr %s169, 4
          %s171 = scalar_lea.vmem %s0, %s170
        $region24: #{tpu_custom_call.1} parent=19 // pred_fallthru
          _
      $region20: #{tpu_custom_call.1} parent=5 // pred_fallthru
        _
      %p172 = scmp.le.s32.totalorder 1, %s17
      %p173 = scmp.lt.s32.totalorder %s17, 3
      %p174 = pnand %p172, %p173
      %p175 = pneg %p174
      // Predicated region
      $region25: #{tpu_custom_call.1} parent=5 // pred_check
        _
      $region26: #{tpu_custom_call.1} parent=5 // pred_check_branch
        %177 = sbr.rel (%p174) target = $region28
      $region27: #{tpu_custom_call.1} parent=5 // pred_region
        %s178 = ssub.s32 %s17, 1
        %p179 = scmp.lt.s32.totalorder %s22, 1
        %s180 = scalar_select %p179, %s22, 1
        %s181 = smul.addr %s180, 18
        %s182 = smul.addr %s181, 4
        %s183 = scalar_lea.vmem %s0, %s182
        %p184 = pneg %p43
        %p185 = pneg %p40
        %p186 = pneg %p64
        %p187 = pneg %p61
        %p188 = pneg %p90
        %p189 = pneg %p87
        %s190 = sand.u32 %s77, 1
        %s191 = scalar_lea.sflag [#allocation3], %s190
        %s192 = sand.u32 %s77, 1
        %s193 = smul.addr %s192, 32
        %s194 = scalar_lea.vmem [#allocation2], %s193
        %p195 = pneg %p116
        %p196 = pneg %p113
        %s197 = sand.u32 %s22, 1
        %s198 = scalar_lea.sflag [#allocation5], %s197
        %s199 = sand.u32 %s103, 1
        %s200 = smul.addr %s199, 8
        %s201 = scalar_lea.vmem [#allocation4], %s200
        %p202 = pneg %p142
        %p203 = pneg %p139
        %s204 = sand.u32 %s22, 1
        %s205 = scalar_lea.sflag [#allocation5], %s204
        %s206 = sand.u32 %s129, 1
        %s207 = smul.addr %s206, 8
        %s208 = scalar_lea.vmem [#allocation6], %s207
        %p209 = scmp.lt.s32.totalorder %s22, 1
        %s210 = scalar_select %p209, %s22, 1
        %s211 = smul.addr %s210, 18
        %s212 = smul.addr %s211, 4
        %s213 = scalar_lea.vmem %s0, %s212
        %v215 = vld [vmem:[%s213] sm:$0xf]
        %v216 = vld [vmem:[%s213 + $0x8] sm:$0xf]
        %v217 = vld [vmem:[%s213 + $0x10] sm:$0xf]
        %v218 = vld [vmem:[%s213 + $0x18] sm:$0xf]
        %v219 = vld [vmem:[%s213 + $0x20] sm:$0xf]
        %v220 = vld [vmem:[%s213 + $0x28] sm:$0xf]
        %v221 = vld [vmem:[%s213 + $0x30] sm:$0xf]
        %v222 = vld [vmem:[%s213 + $0x38] sm:$0xf]
        %v223 = vld [vmem:[%s1] sm:$0xf]
        %v224 = vld [vmem:[%s1 + $0x4] sm:$0xf]
        %v225 = vld [vmem:[%s213 + $0x4] sm:$0x1]
        %v226 = vld [vmem:[%s213 + $0xc] sm:$0x1]
        %v227 = vld [vmem:[%s213 + $0x14] sm:$0x1]
        %v228 = vld [vmem:[%s213 + $0x1c] sm:$0x1]
        %v229 = vld [vmem:[%s213 + $0x24] sm:$0x1]
        %v230 = vld [vmem:[%s213 + $0x2c] sm:$0x1]
        %v231 = vld [vmem:[%s213 + $0x34] sm:$0x1]
        %v232 = vld [vmem:[%s213 + $0x3c] sm:$0x1]
        %vm233 = vsmask.f32 3328
        %vm234 = vsmask.f32 7440
        %vm235 = vmor %vm233, %vm234
        %v237 = vshrl.u32 %v215, 16
        %v239 = vrot.slane %v237, 4
        %v240 = vshll.u32 %v215, 16
        %v242 = vrot.slane %v240, 5
        %v243 = vor.u32 %v239, %v242
        %v244 = vrot.slane %v243, 4
        %v246 = vshll.u32 %v225, 16
        %v248 = vrot.slane %v246, 5
        %v249 = vsel %vm235, %v244, %v248
        %v251 = vshrl.u32 %v216, 16
        %v253 = vrot.slane %v251, 4
        %v254 = vshll.u32 %v216, 16
        %v256 = vrot.slane %v254, 5
        %v257 = vor.u32 %v253, %v256
        %v258 = vrot.slane %v257, 4
        %v260 = vshll.u32 %v226, 16
        %v262 = vrot.slane %v260, 5
        %v263 = vsel %vm235, %v258, %v262
        %v265 = vshrl.u32 %v217, 16
        %v267 = vrot.slane %v265, 4
        %v268 = vshll.u32 %v217, 16
        %v270 = vrot.slane %v268, 5
        %v271 = vor.u32 %v267, %v270
        %v272 = vrot.slane %v271, 4
        %v274 = vshll.u32 %v227, 16
        %v276 = vrot.slane %v274, 5
        %v277 = vsel %vm235, %v272, %v276
        %v279 = vshrl.u32 %v218, 16
        %v281 = vrot.slane %v279, 4
        %v282 = vshll.u32 %v218, 16
        %v284 = vrot.slane %v282, 5
        %v285 = vor.u32 %v281, %v284
        %v286 = vrot.slane %v285, 4
        %v288 = vshll.u32 %v228, 16
        %v290 = vrot.slane %v288, 5
        %v291 = vsel %vm235, %v286, %v290
        %v293 = vshrl.u32 %v219, 16
        %v295 = vrot.slane %v293, 4
        %v296 = vshll.u32 %v219, 16
        %v298 = vrot.slane %v296, 5
        %v299 = vor.u32 %v295, %v298
        %v300 = vrot.slane %v299, 4
        %v302 = vshll.u32 %v229, 16
        %v304 = vrot.slane %v302, 5
        %v305 = vsel %vm235, %v300, %v304
        %v307 = vshrl.u32 %v220, 16
        %v309 = vrot.slane %v307, 4
        %v310 = vshll.u32 %v220, 16
        %v312 = vrot.slane %v310, 5
        %v313 = vor.u32 %v309, %v312
        %v314 = vrot.slane %v313, 4
        %v316 = vshll.u32 %v230, 16
        %v318 = vrot.slane %v316, 5
        %v319 = vsel %vm235, %v314, %v318
        %v321 = vshrl.u32 %v221, 16
        %v323 = vrot.slane %v321, 4
        %v324 = vshll.u32 %v221, 16
        %v326 = vrot.slane %v324, 5
        %v327 = vor.u32 %v323, %v326
        %v328 = vrot.slane %v327, 4
        %v330 = vshll.u32 %v231, 16
        %v332 = vrot.slane %v330, 5
        %v333 = vsel %vm235, %v328, %v332
        %v335 = vshrl.u32 %v222, 16
        %v337 = vrot.slane %v335, 4
        %v338 = vshll.u32 %v222, 16
        %v340 = vrot.slane %v338, 5
        %v341 = vor.u32 %v337, %v340
        %v342 = vrot.slane %v341, 4
        %v344 = vshll.u32 %v232, 16
        %v346 = vrot.slane %v344, 5
        %v347 = vsel %vm235, %v342, %v346
        %s348 = scalar_lea.vmem %s1, 8
        %v349 = vld [vmem:[%s348] sm:$0xf]
        %v350 = vld [vmem:[%s348 + $0x4] sm:$0xf]
        %v351 = vunpack.c.l.b16 %v249
        %v352 = vunpack.c.l.b16 %v263
        %v353 = vunpack.c.l.b16 %v277
        %v354 = vunpack.c.l.b16 %v291
        %v355 = vunpack.c.l.b16 %v305
        %v356 = vunpack.c.l.b16 %v319
        %v357 = vunpack.c.l.b16 %v333
        %v358 = vunpack.c.l.b16 %v347
        %v359 = vpack.c.b16 %v352, %v351
        %v360 = vpack.c.b16 %v354, %v353
        %v361 = vpack.c.b16 %v356, %v355
        %v362 = vpack.c.b16 %v358, %v357
        %v365 = vunpack.c.l.b16 %v349
        %v366 = vunpack.c.l.b16 %v350
        %v367 = vpack.c.b16 %v366, %v365
        %vm369 = vcmask 130048
        %v371 = vsel %vm369, %v359, 0
        %v374 = vsel %vm369, %v360, 0
        %v377 = vsel %vm369, %v361, 0
        %v380 = vsel %vm369, %v362, 0
        %382 = vmatprep.subr.bf16.mxu0 0
        %383 = vmatpush1.bf16.msra.mxu0 0
        %384 = vmatprep.subr.bf16.mxu0 0
        %385 = vmatpush1.bf16.msra.mxu0 0
        %386 = vmatprep.subr.bf16.mxu0 0
        %387 = vmatpush1.bf16.msra.mxu0 0
        %388 = vmatprep.subr.bf16.mxu0 0
        %389 = vmatpush1.bf16.msra.mxu0 0
        %390 = vmatprep.subr.bf16.mxu0 0
        %391 = vmatpush1.bf16.msra.mxu0 0
        %392 = vmatprep.subr.bf16.mxu0 0
        %393 = vmatpush1.bf16.msra.mxu0 0
        %394 = vmatprep.subr.bf16.mxu0 0
        %395 = vmatpush1.bf16.msra.mxu0 0
        %396 = vmatprep.subr.bf16.mxu0 0
        %397 = vmatpush1.bf16.msra.mxu0 %v367
        %398 = vmatprep.subr.bf16.mxu0 0
        %399 = vmatpush2.bf16.msra.mxu0 0
        %400 = vmatprep.subr.bf16.mxu0 0
        %401 = vmatpush2.bf16.msra.mxu0 0
        %402 = vmatprep.subr.bf16.mxu0 0
        %403 = vmatpush2.bf16.msra.mxu0 0
        %404 = vmatprep.subr.bf16.mxu0 0
        %405 = vmatpush2.bf16.msra.mxu0 0
        %406 = vmatprep.subr.bf16.mxu0 0
        %407 = vmatpush2.bf16.msra.mxu0 0
        %408 = vmatprep.subr.bf16.mxu0 0
        %409 = vmatpush2.bf16.msra.mxu0 0
        %410 = vmatprep.subr.bf16.mxu0 0
        %411 = vmatpush2.bf16.msra.mxu0 0
        %412 = vmatprep.subr.bf16.mxu0 0
        %413 = vmatpush2.bf16.msra.mxu0 0
        %414 = vmatprep.mubr.bf16.mxu0 0
        %415 = vmatmul.mubr.bf16.gmra.mxu0 %v371
        %v416 = vpop.f32.mrf.mxu0
        %v417 = vadd.f32 0.0, %v416
        %v418 = vpop.f32.mrf.mxu0
        %v419 = vpop.f32.mrf.mxu0
        %v420 = vadd.f32 0.0, %v419
        %v421 = vpop.f32.mrf.mxu0
        %422 = vmatprep.mubr.bf16.mxu0 0
        %423 = vmatmul.mubr.bf16.gmra.mxu0 %v374
        %v424 = vpop.f32.mrf.mxu0
        %v425 = vadd.f32 0.0, %v424
        %v426 = vpop.f32.mrf.mxu0
        %v427 = vpop.f32.mrf.mxu0
        %v428 = vadd.f32 0.0, %v427
        %v429 = vpop.f32.mrf.mxu0
        %430 = vmatprep.mubr.bf16.mxu0 0
        %431 = vmatmul.mubr.bf16.gmra.mxu0 %v377
        %v432 = vpop.f32.mrf.mxu0
        %v433 = vadd.f32 0.0, %v432
        %v434 = vpop.f32.mrf.mxu0
        %v435 = vpop.f32.mrf.mxu0
        %v436 = vadd.f32 0.0, %v435
        %v437 = vpop.f32.mrf.mxu0
        %438 = vmatprep.mubr.bf16.mxu0 0
        %439 = vmatmul.mubr.bf16.gmra.mxu0 %v380
        %v440 = vpop.f32.mrf.mxu0
        %v441 = vadd.f32 0.0, %v440
        %v442 = vpop.f32.mrf.mxu0
        %v443 = vpop.f32.mrf.mxu0
        %v444 = vadd.f32 0.0, %v443
        %v445 = vpop.f32.mrf.mxu0
        %446 = vdwg.mxu0
        %v455 = vunpack.c.l.b16 %v215
        %v456 = vunpack.c.l.b16 %v216
        %v457 = vunpack.c.l.b16 %v217
        %v458 = vunpack.c.l.b16 %v218
        %v459 = vunpack.c.l.b16 %v219
        %v460 = vunpack.c.l.b16 %v220
        %v461 = vunpack.c.l.b16 %v221
        %v462 = vunpack.c.l.b16 %v222
        %v463 = vpack.c.b16 %v456, %v455
        %v464 = vpack.c.b16 %v458, %v457
        %v465 = vpack.c.b16 %v460, %v459
        %v466 = vpack.c.b16 %v462, %v461
        %v469 = vunpack.c.l.b16 %v223
        %v470 = vunpack.c.l.b16 %v224
        %v471 = vpack.c.b16 %v470, %v469
        %v474 = vsel %vm369, %v463, 0
        %v477 = vsel %vm369, %v464, 0
        %v480 = vsel %vm369, %v465, 0
        %v483 = vsel %vm369, %v466, 0
        %485 = vmatprep.subr.bf16.mxu0 0
        %486 = vmatpush1.bf16.msra.mxu0 0
        %487 = vmatprep.subr.bf16.mxu0 0
        %488 = vmatpush1.bf16.msra.mxu0 0
        %489 = vmatprep.subr.bf16.mxu0 0
        %490 = vmatpush1.bf16.msra.mxu0 0
        %491 = vmatprep.subr.bf16.mxu0 0
        %492 = vmatpush1.bf16.msra.mxu0 0
        %493 = vmatprep.subr.bf16.mxu0 0
        %494 = vmatpush1.bf16.msra.mxu0 0
        %495 = vmatprep.subr.bf16.mxu0 0
        %496 = vmatpush1.bf16.msra.mxu0 0
        %497 = vmatprep.subr.bf16.mxu0 0
        %498 = vmatpush1.bf16.msra.mxu0 0
        %499 = vmatprep.subr.bf16.mxu0 0
        %500 = vmatpush1.bf16.msra.mxu0 %v471
        %501 = vmatprep.subr.bf16.mxu0 0
        %502 = vmatpush2.bf16.msra.mxu0 0
        %503 = vmatprep.subr.bf16.mxu0 0
        %504 = vmatpush2.bf16.msra.mxu0 0
        %505 = vmatprep.subr.bf16.mxu0 0
        %506 = vmatpush2.bf16.msra.mxu0 0
        %507 = vmatprep.subr.bf16.mxu0 0
        %508 = vmatpush2.bf16.msra.mxu0 0
        %509 = vmatprep.subr.bf16.mxu0 0
        %510 = vmatpush2.bf16.msra.mxu0 0
        %511 = vmatprep.subr.bf16.mxu0 0
        %512 = vmatpush2.bf16.msra.mxu0 0
        %513 = vmatprep.subr.bf16.mxu0 0
        %514 = vmatpush2.bf16.msra.mxu0 0
        %515 = vmatprep.subr.bf16.mxu0 0
        %516 = vmatpush2.bf16.msra.mxu0 0
        %517 = vmatprep.mubr.bf16.mxu0 0
        %518 = vmatmul.mubr.bf16.gmra.mxu0 %v474
        %v519 = vpop.f32.mrf.mxu0
        %v520 = vadd.f32 %v417, %v519
        %v521 = vpop.f32.mrf.mxu0
        %v522 = vpop.f32.mrf.mxu0
        %v523 = vadd.f32 %v420, %v522
        %v524 = vpop.f32.mrf.mxu0
        %525 = vmatprep.mubr.bf16.mxu0 0
        %526 = vmatmul.mubr.bf16.gmra.mxu0 %v477
        %v527 = vpop.f32.mrf.mxu0
        %v528 = vadd.f32 %v425, %v527
        %v529 = vpop.f32.mrf.mxu0
        %v530 = vpop.f32.mrf.mxu0
        %v531 = vadd.f32 %v428, %v530
        %v532 = vpop.f32.mrf.mxu0
        %533 = vmatprep.mubr.bf16.mxu0 0
        %534 = vmatmul.mubr.bf16.gmra.mxu0 %v480
        %v535 = vpop.f32.mrf.mxu0
        %v536 = vadd.f32 %v433, %v535
        %v537 = vpop.f32.mrf.mxu0
        %v538 = vpop.f32.mrf.mxu0
        %v539 = vadd.f32 %v436, %v538
        %v540 = vpop.f32.mrf.mxu0
        %541 = vmatprep.mubr.bf16.mxu0 0
        %542 = vmatmul.mubr.bf16.gmra.mxu0 %v483
        %v543 = vpop.f32.mrf.mxu0
        %v544 = vadd.f32 %v441, %v543
        %v545 = vpop.f32.mrf.mxu0
        %v546 = vpop.f32.mrf.mxu0
        %v547 = vadd.f32 %v444, %v546
        %v548 = vpop.f32.mrf.mxu0
        %549 = vdwg.mxu0
        %s550 = scalar_lea.vmem %s213, 8
        %v551 = vld [vmem:[%s550] sm:$0xf]
        %v552 = vld [vmem:[%s550 + $0x8] sm:$0xf]
        %v553 = vld [vmem:[%s550 + $0x10] sm:$0xf]
        %v554 = vld [vmem:[%s550 + $0x18] sm:$0xf]
        %v555 = vld [vmem:[%s550 + $0x20] sm:$0xf]
        %v556 = vld [vmem:[%s550 + $0x28] sm:$0xf]
        %v557 = vld [vmem:[%s550 + $0x30] sm:$0xf]
        %v558 = vld [vmem:[%s550 + $0x38] sm:$0xf]
        %s559 = scalar_lea.vmem %s1, 16
        %v560 = vld [vmem:[%s559] sm:$0xf]
        %v561 = vld [vmem:[%s559 + $0x4] sm:$0xf]
        %v570 = vunpack.c.l.b16 %v551
        %v571 = vunpack.c.l.b16 %v552
        %v572 = vunpack.c.l.b16 %v553
        %v573 = vunpack.c.l.b16 %v554
        %v574 = vunpack.c.l.b16 %v555
        %v575 = vunpack.c.l.b16 %v556
        %v576 = vunpack.c.l.b16 %v557
        %v577 = vunpack.c.l.b16 %v558
        %v578 = vpack.c.b16 %v571, %v570
        %v579 = vpack.c.b16 %v573, %v572
        %v580 = vpack.c.b16 %v575, %v574
        %v581 = vpack.c.b16 %v577, %v576
        %v584 = vunpack.c.l.b16 %v560
        %v585 = vunpack.c.l.b16 %v561
        %v586 = vpack.c.b16 %v585, %v584
        %v589 = vsel %vm369, %v578, 0
        %v592 = vsel %vm369, %v579, 0
        %v595 = vsel %vm369, %v580, 0
        %v598 = vsel %vm369, %v581, 0
        %600 = vmatprep.subr.bf16.mxu0 0
        %601 = vmatpush1.bf16.msra.mxu0 0
        %602 = vmatprep.subr.bf16.mxu0 0
        %603 = vmatpush1.bf16.msra.mxu0 0
        %604 = vmatprep.subr.bf16.mxu0 0
        %605 = vmatpush1.bf16.msra.mxu0 0
        %606 = vmatprep.subr.bf16.mxu0 0
        %607 = vmatpush1.bf16.msra.mxu0 0
        %608 = vmatprep.subr.bf16.mxu0 0
        %609 = vmatpush1.bf16.msra.mxu0 0
        %610 = vmatprep.subr.bf16.mxu0 0
        %611 = vmatpush1.bf16.msra.mxu0 0
        %612 = vmatprep.subr.bf16.mxu0 0
        %613 = vmatpush1.bf16.msra.mxu0 0
        %614 = vmatprep.subr.bf16.mxu0 0
        %615 = vmatpush1.bf16.msra.mxu0 %v586
        %616 = vmatprep.subr.bf16.mxu0 0
        %617 = vmatpush2.bf16.msra.mxu0 0
        %618 = vmatprep.subr.bf16.mxu0 0
        %619 = vmatpush2.bf16.msra.mxu0 0
        %620 = vmatprep.subr.bf16.mxu0 0
        %621 = vmatpush2.bf16.msra.mxu0 0
        %622 = vmatprep.subr.bf16.mxu0 0
        %623 = vmatpush2.bf16.msra.mxu0 0
        %624 = vmatprep.subr.bf16.mxu0 0
        %625 = vmatpush2.bf16.msra.mxu0 0
        %626 = vmatprep.subr.bf16.mxu0 0
        %627 = vmatpush2.bf16.msra.mxu0 0
        %628 = vmatprep.subr.bf16.mxu0 0
        %629 = vmatpush2.bf16.msra.mxu0 0
        %630 = vmatprep.subr.bf16.mxu0 0
        %631 = vmatpush2.bf16.msra.mxu0 0
        %632 = vmatprep.mubr.bf16.mxu0 0
        %633 = vmatmul.mubr.bf16.gmra.mxu0 %v589
        %v634 = vpop.f32.mrf.mxu0
        %v635 = vadd.f32 0.0, %v634
        %v636 = vpop.f32.mrf.mxu0
        %v637 = vpop.f32.mrf.mxu0
        %v638 = vadd.f32 0.0, %v637
        %v639 = vpop.f32.mrf.mxu0
        %640 = vmatprep.mubr.bf16.mxu0 0
        %641 = vmatmul.mubr.bf16.gmra.mxu0 %v592
        %v642 = vpop.f32.mrf.mxu0
        %v643 = vadd.f32 0.0, %v642
        %v644 = vpop.f32.mrf.mxu0
        %v645 = vpop.f32.mrf.mxu0
        %v646 = vadd.f32 0.0, %v645
        %v647 = vpop.f32.mrf.mxu0
        %648 = vmatprep.mubr.bf16.mxu0 0
        %649 = vmatmul.mubr.bf16.gmra.mxu0 %v595
        %v650 = vpop.f32.mrf.mxu0
        %v651 = vadd.f32 0.0, %v650
        %v652 = vpop.f32.mrf.mxu0
        %v653 = vpop.f32.mrf.mxu0
        %v654 = vadd.f32 0.0, %v653
        %v655 = vpop.f32.mrf.mxu0
        %656 = vmatprep.mubr.bf16.mxu0 0
        %657 = vmatmul.mubr.bf16.gmra.mxu0 %v598
        %v658 = vpop.f32.mrf.mxu0
        %v659 = vadd.f32 0.0, %v658
        %v660 = vpop.f32.mrf.mxu0
        %v661 = vpop.f32.mrf.mxu0
        %v662 = vadd.f32 0.0, %v661
        %v663 = vpop.f32.mrf.mxu0
        %664 = vdwg.mxu0
        %v665 = vadd.f32 %v520, %v635
        %v666 = vadd.f32 %v523, %v638
        %v667 = vadd.f32 %v528, %v643
        %v668 = vadd.f32 %v531, %v646
        %v669 = vadd.f32 %v536, %v651
        %v670 = vadd.f32 %v539, %v654
        %v671 = vadd.f32 %v544, %v659
        %v672 = vadd.f32 %v547, %v662
        %v673 = vld [vmem:[%s550] sm:$0xf]
        %v674 = vld [vmem:[%s550 + $0x4] sm:$0x1]
        %v675 = vld [vmem:[%s550 + $0x8] sm:$0xf]
        %v676 = vld [vmem:[%s550 + $0xc] sm:$0x1]
        %v677 = vld [vmem:[%s550 + $0x10] sm:$0xf]
        %v678 = vld [vmem:[%s550 + $0x14] sm:$0x1]
        %v679 = vld [vmem:[%s550 + $0x18] sm:$0xf]
        %v680 = vld [vmem:[%s550 + $0x1c] sm:$0x1]
        %v681 = vld [vmem:[%s550 + $0x20] sm:$0xf]
        %v682 = vld [vmem:[%s550 + $0x24] sm:$0x1]
        %v683 = vld [vmem:[%s550 + $0x28] sm:$0xf]
        %v684 = vld [vmem:[%s550 + $0x2c] sm:$0x1]
        %v685 = vld [vmem:[%s550 + $0x30] sm:$0xf]
        %v686 = vld [vmem:[%s550 + $0x34] sm:$0x1]
        %v687 = vld [vmem:[%s550 + $0x38] sm:$0xf]
        %v688 = vld [vmem:[%s550 + $0x3c] sm:$0x1]
        %v690 = vshrl.u32 %v673, 16
        %v692 = vrot.slane %v690, 4
        %v693 = vshll.u32 %v673, 16
        %v695 = vrot.slane %v693, 5
        %v696 = vor.u32 %v692, %v695
        %v697 = vrot.slane %v696, 4
        %v699 = vshll.u32 %v674, 16
        %v701 = vrot.slane %v699, 5
        %v702 = vsel %vm235, %v697, %v701
        %v704 = vshrl.u32 %v675, 16
        %v706 = vrot.slane %v704, 4
        %v707 = vshll.u32 %v675, 16
        %v709 = vrot.slane %v707, 5
        %v710 = vor.u32 %v706, %v709
        %v711 = vrot.slane %v710, 4
        %v713 = vshll.u32 %v676, 16
        %v715 = vrot.slane %v713, 5
        %v716 = vsel %vm235, %v711, %v715
        %v718 = vshrl.u32 %v677, 16
        %v720 = vrot.slane %v718, 4
        %v721 = vshll.u32 %v677, 16
        %v723 = vrot.slane %v721, 5
        %v724 = vor.u32 %v720, %v723
        %v725 = vrot.slane %v724, 4
        %v727 = vshll.u32 %v678, 16
        %v729 = vrot.slane %v727, 5
        %v730 = vsel %vm235, %v725, %v729
        %v732 = vshrl.u32 %v679, 16
        %v734 = vrot.slane %v732, 4
        %v735 = vshll.u32 %v679, 16
        %v737 = vrot.slane %v735, 5
        %v738 = vor.u32 %v734, %v737
        %v739 = vrot.slane %v738, 4
        %v741 = vshll.u32 %v680, 16
        %v743 = vrot.slane %v741, 5
        %v744 = vsel %vm235, %v739, %v743
        %v746 = vshrl.u32 %v681, 16
        %v748 = vrot.slane %v746, 4
        %v749 = vshll.u32 %v681, 16
        %v751 = vrot.slane %v749, 5
        %v752 = vor.u32 %v748, %v751
        %v753 = vrot.slane %v752, 4
        %v755 = vshll.u32 %v682, 16
        %v757 = vrot.slane %v755, 5
        %v758 = vsel %vm235, %v753, %v757
        %v760 = vshrl.u32 %v683, 16
        %v762 = vrot.slane %v760, 4
        %v763 = vshll.u32 %v683, 16
        %v765 = vrot.slane %v763, 5
        %v766 = vor.u32 %v762, %v765
        %v767 = vrot.slane %v766, 4
        %v769 = vshll.u32 %v684, 16
        %v771 = vrot.slane %v769, 5
        %v772 = vsel %vm235, %v767, %v771
        %v774 = vshrl.u32 %v685, 16
        %v776 = vrot.slane %v774, 4
        %v777 = vshll.u32 %v685, 16
        %v779 = vrot.slane %v777, 5
        %v780 = vor.u32 %v776, %v779
        %v781 = vrot.slane %v780, 4
        %v783 = vshll.u32 %v686, 16
        %v785 = vrot.slane %v783, 5
        %v786 = vsel %vm235, %v781, %v785
        %v788 = vshrl.u32 %v687, 16
        %v790 = vrot.slane %v788, 4
        %v791 = vshll.u32 %v687, 16
        %v793 = vrot.slane %v791, 5
        %v794 = vor.u32 %v790, %v793
        %v795 = vrot.slane %v794, 4
        %v797 = vshll.u32 %v688, 16
        %v799 = vrot.slane %v797, 5
        %v800 = vsel %vm235, %v795, %v799
        %s801 = scalar_lea.vmem %s1, 24
        %v802 = vld [vmem:[%s801] sm:$0xf]
        %v803 = vld [vmem:[%s801 + $0x4] sm:$0xf]
        %v804 = vunpack.c.l.b16 %v702
        %v805 = vunpack.c.l.b16 %v716
        %v806 = vunpack.c.l.b16 %v730
        %v807 = vunpack.c.l.b16 %v744
        %v808 = vunpack.c.l.b16 %v758
        %v809 = vunpack.c.l.b16 %v772
        %v810 = vunpack.c.l.b16 %v786
        %v811 = vunpack.c.l.b16 %v800
        %v812 = vpack.c.b16 %v805, %v804
        %v813 = vpack.c.b16 %v807, %v806
        %v814 = vpack.c.b16 %v809, %v808
        %v815 = vpack.c.b16 %v811, %v810
        %v818 = vunpack.c.l.b16 %v802
        %v819 = vunpack.c.l.b16 %v803
        %v820 = vpack.c.b16 %v819, %v818
        %v823 = vsel %vm369, %v812, 0
        %v826 = vsel %vm369, %v813, 0
        %v829 = vsel %vm369, %v814, 0
        %v832 = vsel %vm369, %v815, 0
        %834 = vmatprep.subr.bf16.mxu0 0
        %835 = vmatpush1.bf16.msra.mxu0 0
        %836 = vmatprep.subr.bf16.mxu0 0
        %837 = vmatpush1.bf16.msra.mxu0 0
        %838 = vmatprep.subr.bf16.mxu0 0
        %839 = vmatpush1.bf16.msra.mxu0 0
        %840 = vmatprep.subr.bf16.mxu0 0
        %841 = vmatpush1.bf16.msra.mxu0 0
        %842 = vmatprep.subr.bf16.mxu0 0
        %843 = vmatpush1.bf16.msra.mxu0 0
        %844 = vmatprep.subr.bf16.mxu0 0
        %845 = vmatpush1.bf16.msra.mxu0 0
        %846 = vmatprep.subr.bf16.mxu0 0
        %847 = vmatpush1.bf16.msra.mxu0 0
        %848 = vmatprep.subr.bf16.mxu0 0
        %849 = vmatpush1.bf16.msra.mxu0 %v820
        %850 = vmatprep.subr.bf16.mxu0 0
        %851 = vmatpush2.bf16.msra.mxu0 0
        %852 = vmatprep.subr.bf16.mxu0 0
        %853 = vmatpush2.bf16.msra.mxu0 0
        %854 = vmatprep.subr.bf16.mxu0 0
        %855 = vmatpush2.bf16.msra.mxu0 0
        %856 = vmatprep.subr.bf16.mxu0 0
        %857 = vmatpush2.bf16.msra.mxu0 0
        %858 = vmatprep.subr.bf16.mxu0 0
        %859 = vmatpush2.bf16.msra.mxu0 0
        %860 = vmatprep.subr.bf16.mxu0 0
        %861 = vmatpush2.bf16.msra.mxu0 0
        %862 = vmatprep.subr.bf16.mxu0 0
        %863 = vmatpush2.bf16.msra.mxu0 0
        %864 = vmatprep.subr.bf16.mxu0 0
        %865 = vmatpush2.bf16.msra.mxu0 0
        %866 = vmatprep.mubr.bf16.mxu0 0
        %867 = vmatmul.mubr.bf16.gmra.mxu0 %v823
        %v868 = vpop.f32.mrf.mxu0
        %v869 = vadd.f32 0.0, %v868
        %v870 = vpop.f32.mrf.mxu0
        %v871 = vpop.f32.mrf.mxu0
        %v872 = vadd.f32 0.0, %v871
        %v873 = vpop.f32.mrf.mxu0
        %874 = vmatprep.mubr.bf16.mxu0 0
        %875 = vmatmul.mubr.bf16.gmra.mxu0 %v826
        %v876 = vpop.f32.mrf.mxu0
        %v877 = vadd.f32 0.0, %v876
        %v878 = vpop.f32.mrf.mxu0
        %v879 = vpop.f32.mrf.mxu0
        %v880 = vadd.f32 0.0, %v879
        %v881 = vpop.f32.mrf.mxu0
        %882 = vmatprep.mubr.bf16.mxu0 0
        %883 = vmatmul.mubr.bf16.gmra.mxu0 %v829
        %v884 = vpop.f32.mrf.mxu0
        %v885 = vadd.f32 0.0, %v884
        %v886 = vpop.f32.mrf.mxu0
        %v887 = vpop.f32.mrf.mxu0
        %v888 = vadd.f32 0.0, %v887
        %v889 = vpop.f32.mrf.mxu0
        %890 = vmatprep.mubr.bf16.mxu0 0
        %891 = vmatmul.mubr.bf16.gmra.mxu0 %v832
        %v892 = vpop.f32.mrf.mxu0
        %v893 = vadd.f32 0.0, %v892
        %v894 = vpop.f32.mrf.mxu0
        %v895 = vpop.f32.mrf.mxu0
        %v896 = vadd.f32 0.0, %v895
        %v897 = vpop.f32.mrf.mxu0
        %898 = vdwg.mxu0
        %v899 = vadd.f32 %v665, %v869
        %v900 = vadd.f32 %v666, %v872
        %v901 = vadd.f32 %v667, %v877
        %v902 = vadd.f32 %v668, %v880
        %v903 = vadd.f32 %v669, %v885
        %v904 = vadd.f32 %v670, %v888
        %v905 = vadd.f32 %v671, %v893
        %v906 = vadd.f32 %v672, %v896
        %v907 = vpack.c.bf16 %v900, %v899
        %v908 = vpack.c.bf16 %v902, %v901
        %v909 = vpack.c.bf16 %v904, %v903
        %v910 = vpack.c.bf16 %v906, %v905
        %v915 = vunpack.c.l.b16 %v907
        %v916 = vunpack.c.h.b16 %v907
        %v917 = vunpack.c.l.b16 %v908
        %v918 = vunpack.c.h.b16 %v908
        %v919 = vunpack.c.l.b16 %v909
        %v920 = vunpack.c.h.b16 %v909
        %v921 = vunpack.c.l.b16 %v910
        %v922 = vunpack.c.h.b16 %v910
        %v923 = vpack.c.b16 %v915, %v915
        %v924 = vpack.c.b16 %v916, %v916
        %v925 = vpack.c.b16 %v917, %v917
        %v926 = vpack.c.b16 %v918, %v918
        %v927 = vpack.c.b16 %v919, %v919
        %v928 = vpack.c.b16 %v920, %v920
        %v929 = vpack.c.b16 %v921, %v921
        %v930 = vpack.c.b16 %v922, %v922
        %939 = vst [vmem:[%s194] sm:$0xf] %v923
        %940 = vst [vmem:[%s194 + $0x4] sm:$0xf] %v924
        %941 = vst [vmem:[%s194 + $0x8] sm:$0xf] %v925
        %942 = vst [vmem:[%s194 + $0xc] sm:$0xf] %v926
        %943 = vst [vmem:[%s194 + $0x10] sm:$0xf] %v927
        %944 = vst [vmem:[%s194 + $0x14] sm:$0xf] %v928
        %945 = vst [vmem:[%s194 + $0x18] sm:$0xf] %v929
        %946 = vst [vmem:[%s194 + $0x1c] sm:$0xf] %v930
        %v947 = vadd.f32 %v899, %v900
        %v948 = vadd.f32 %v947, %v901
        %v949 = vadd.f32 %v948, %v902
        %v950 = vadd.f32 %v949, %v903
        %v951 = vadd.f32 %v950, %v904
        %v952 = vadd.f32 %v951, %v905
        %v953 = vadd.f32 %v952, %v906
        %v954 = vrot.slane %v953, 4
        %v955 = vadd.f32 %v953, %v954
        %v956 = vrot.slane %v955, 2
        %v957 = vadd.f32 %v955, %v956
        %v958 = vrot.slane %v957, 1
        %v959 = vadd.f32 %v957, %v958
        %v960 = vmul.f32 %v959, 0.015625
        %v961 = vsub.f32 %v899, %v960
        %v962 = vsub.f32 %v900, %v960
        %v963 = vsub.f32 %v901, %v960
        %v964 = vsub.f32 %v902, %v960
        %v965 = vsub.f32 %v903, %v960
        %v966 = vsub.f32 %v904, %v960
        %v967 = vsub.f32 %v905, %v960
        %v968 = vsub.f32 %v906, %v960
        %v969 = vmul.f32 %v961, %v961
        %v970 = vmul.f32 %v962, %v962
        %v971 = vmul.f32 %v963, %v963
        %v972 = vmul.f32 %v964, %v964
        %v973 = vmul.f32 %v965, %v965
        %v974 = vmul.f32 %v966, %v966
        %v975 = vmul.f32 %v967, %v967
        %v976 = vmul.f32 %v968, %v968
        %v977 = vadd.f32 %v969, %v970
        %v978 = vadd.f32 %v977, %v971
        %v979 = vadd.f32 %v978, %v972
        %v980 = vadd.f32 %v979, %v973
        %v981 = vadd.f32 %v980, %v974
        %v982 = vadd.f32 %v981, %v975
        %v983 = vadd.f32 %v982, %v976
        %v984 = vrot.slane %v983, 4
        %v985 = vadd.f32 %v983, %v984
        %v986 = vrot.slane %v985, 2
        %v987 = vadd.f32 %v985, %v986
        %v988 = vrot.slane %v987, 1
        %v989 = vadd.f32 %v987, %v988
        %990 = vst [vmem:[%s201] sm:$0x1] %v959
        %991 = vst [vmem:[%s208] sm:$0x1] %v989
        %s992 = sand.u32 %s77, 1
        %s993 = scalar_lea.sflag [#allocation3], %s992
        %s994 = sand.u32 %s77, 1
        %s995 = smul.addr %s994, 32
        %s996 = scalar_lea.vmem [#allocation2], %s995
        %s997 = sand.u32 %s22, 1
        %s998 = scalar_lea.sflag [#allocation5], %s997
        %s999 = sand.u32 %s103, 1
        %s1000 = smul.addr %s999, 8
        %s1001 = scalar_lea.vmem [#allocation4], %s1000
        %s1002 = sand.u32 %s22, 1
        %s1003 = scalar_lea.sflag [#allocation5], %s1002
        %s1004 = sand.u32 %s129, 1
        %s1005 = smul.addr %s1004, 8
        %s1006 = scalar_lea.vmem [#allocation6], %s1005
        // Predicated region
        $region29: #{tpu_custom_call.1} parent=27 // pred_check
          %p1007 = pneg %p87
        $region30: #{tpu_custom_call.1} parent=27 // pred_check_branch
          %1009 = sbr.rel (%p1007) target = $region32
        $region31: #{tpu_custom_call.1} parent=27 // pred_region
          %s1011 = ssub.s32 512, 512
          %1012 = vsyncadd %s993, %s1011
          %s1013 = smul.addr %s22, 8
          %s1014 = smul.addr %s1013, 64
          %s1015 = scalar_lea.hbm %s2, %s1014
          %s1016 = sshll.u32 %s996, 4
          %s1017 = int_to_ptr.vmem [resolvable:$true] %s1016
          %1022 = dma.vmem_to_hbm [thread:$0]  %s1017, 512, %s1015, %s993, 64, 64, 4
        $region32: #{tpu_custom_call.1} parent=27 // pred_fallthru
          _
        // Predicated region
        $region33: #{tpu_custom_call.1} parent=27 // pred_check
          %p1023 = pneg %p113
        $region34: #{tpu_custom_call.1} parent=27 // pred_check_branch
          %1025 = sbr.rel (%p1023) target = $region36
        $region35: #{tpu_custom_call.1} parent=27 // pred_region
          %s1027 = ssub.s32 128, 128
          %1028 = vsyncadd %s998, %s1027
          %s1029 = smul.addr %s22, 128
          %s1030 = scalar_lea.hbm %s3, %s1029
          %s1032 = sshll.u32 %s1001, 4
          %s1033 = int_to_ptr.vmem [resolvable:$true] %s1032
          %1035 = dma.vmem_to_hbm [thread:$0]  %s1033, 128, %s1030, %s998
        $region36: #{tpu_custom_call.1} parent=27 // pred_fallthru
          _
        // Predicated region
        $region37: #{tpu_custom_call.1} parent=27 // pred_check
          %p1036 = pneg %p139
        $region38: #{tpu_custom_call.1} parent=27 // pred_check_branch
          %1038 = sbr.rel (%p1036) target = $region40
        $region39: #{tpu_custom_call.1} parent=27 // pred_region
          %s1040 = ssub.s32 128, 128
          %1041 = vsyncadd %s1003, %s1040
          %s1042 = smul.addr %s22, 128
          %s1043 = scalar_lea.hbm %s4, %s1042
          %s1045 = sshll.u32 %s1006, 4
          %s1046 = int_to_ptr.vmem [resolvable:$true] %s1045
          %1048 = dma.vmem_to_hbm [thread:$0]  %s1046, 128, %s1043, %s1003
        $region40: #{tpu_custom_call.1} parent=27 // pred_fallthru
          _
      $region28: #{tpu_custom_call.1} parent=5 // pred_fallthru
        _
      %p1049 = scmp.le.s32.totalorder 2, %s17
      // Predicated region
      $region41: #{tpu_custom_call.1} parent=5 // pred_check
        %p1050 = pneg %p1049
      $region42: #{tpu_custom_call.1} parent=5 // pred_check_branch
        %1052 = sbr.rel (%p1050) target = $region44
      $region43: #{tpu_custom_call.1} parent=5 // pred_region
        %s1053 = ssub.s32 %s17, 2
        // Predicated region
        $region45: #{tpu_custom_call.1} parent=43 // pred_check
          %p1054 = pneg %p93
        $region46: #{tpu_custom_call.1} parent=43 // pred_check_branch
          %1056 = sbr.rel (%p1054) target = $region48
        $region47: #{tpu_custom_call.1} parent=43 // pred_region
          %s1057 = sand.u32 %s78, 1
          %s1058 = scalar_lea.sflag [#allocation3], %s1057
          %s1059 = sand.u32 %s78, 1
          %s1060 = smul.addr %s1059, 32
          %s1061 = scalar_lea.vmem [#allocation2], %s1060
          %1062 = dma.done %s1058, 512
        $region48: #{tpu_custom_call.1} parent=43 // pred_fallthru
          _
        // Predicated region
        $region49: #{tpu_custom_call.1} parent=43 // pred_check
          %p1063 = pneg %p119
        $region50: #{tpu_custom_call.1} parent=43 // pred_check_branch
          %1065 = sbr.rel (%p1063) target = $region52
        $region51: #{tpu_custom_call.1} parent=43 // pred_region
          %s1066 = sand.u32 %s23, 1
          %s1067 = scalar_lea.sflag [#allocation5], %s1066
          %s1068 = sand.u32 %s104, 1
          %s1069 = smul.addr %s1068, 8
          %s1070 = scalar_lea.vmem [#allocation4], %s1069
          %1071 = dma.done %s1067, 128
        $region52: #{tpu_custom_call.1} parent=43 // pred_fallthru
          _
        // Predicated region
        $region53: #{tpu_custom_call.1} parent=43 // pred_check
          %p1072 = pneg %p145
        $region54: #{tpu_custom_call.1} parent=43 // pred_check_branch
          %1074 = sbr.rel (%p1072) target = $region56
        $region55: #{tpu_custom_call.1} parent=43 // pred_region
          %s1075 = sand.u32 %s23, 1
          %s1076 = scalar_lea.sflag [#allocation5], %s1075
          %s1077 = sand.u32 %s130, 1
          %s1078 = smul.addr %s1077, 8
          %s1079 = scalar_lea.vmem [#allocation6], %s1078
          %1080 = dma.done %s1076, 128
        $region56: #{tpu_custom_call.1} parent=43 // pred_fallthru
          _
      $region44: #{tpu_custom_call.1} parent=5 // pred_fallthru
        _
    $region6: #{tpu_custom_call.1} parent=1 // loop_footer
      %s21 = sadd.s32 1, %s17
    $region7: #{tpu_custom_call.1} parent=1 // loop_footer_branch
      %16 = sbr.rel target = $region3
    $region8: #{tpu_custom_call.1} parent=1 // loop_exit
      _
    %1081 = vsyncpa [#allocation3], 1
    %s1082 = scalar_lea.sflag [#allocation3], 1
    %1083 = vsyncpa %s1082, 1
    %1084 = vsyncpa [#allocation5], 1
    %s1085 = scalar_lea.sflag [#allocation5], 1
    %1086 = vsyncpa %s1085, 1

</llo_original>
